<compile_context>
chip_gen: v6e
topology: v6e:2x2x1
jax: 0.10.0
libtpu: 0.0.40
codegen_flags: <defaults>
</compile_context>

<pallas_src>
import jax
import jax.numpy as jnp
from jax.experimental import pallas as pl
from jax.experimental.pallas import tpu as pltpu


def _round_up(x, m):
    return ((x + m - 1) // m) * m


def _vmem_capacity_bytes():
    """Physical per-core VMEM (generation aware); conservative fallback."""
    try:
        return int(pltpu.get_tpu_info().vmem_capacity_bytes)
    except Exception:
        return 64 << 20  # v7x per-TensorCore VMEM (smallest of the targets)


def _pick_batch_tile(batch, channels, hw, itemsize, target_bytes):
    """Batch rows per grid step.

    Whole batch when it fits the target; otherwise a multiple of 8 (<= 128) so
    partial trailing blocks keep (8, 128)-aligned output stores.
    """
    min_thw = min(hw, 128)
    row_bytes = max(1, channels * min_thw * itemsize)
    tb = target_bytes // row_bytes
    if tb >= batch:
        return int(batch)
    tb = min(tb, 128)
    tb = max(8, (tb // 8) * 8)
    return int(min(tb, batch))


def _pick_hw_chunk(hw, tb, channels, itemsize, target_bytes):
    """Spatial positions per grid step (reduction axis).

    Either the full HW extent or a multiple of 128 (lane width), as required
    by the (8, 128) BlockSpec divisibility rule.
    """
    if hw <= 128:
        return int(hw)
    row_bytes = max(1, tb * channels * itemsize)
    thw = (target_bytes // row_bytes) // 128 * 128
    if thw >= hw:
        return int(hw)
    return int(max(128, thw))


def _make_head_kernel(hw_total, thw, mask_tail):
    """Builds the per-(batch tile, HW chunk) kernel body.

    feat_ref:  (TB, C, THW)  encoder features in native NCHW layout
    w_ref:     (C, Kp)       temp * F.normalize(mu, dim=1), transposed+padded
    score_ref: (TB, Kp)      written on the last HW chunk
    xf_ref:    (TB, C)       pooled features, written on the last HW chunk
    acc_ref:   (TB, C) f32   spatial-sum accumulator (VMEM scratch)
    """
    inv_hw = float(1.0 / hw_total)

    def kernel(feat_ref, w_ref, score_ref, xf_ref, acc_ref):
        j = pl.program_id(1)

        @pl.when(j == 0)
        def _():
            acc_ref[...] = jnp.zeros_like(acc_ref)

        feat = feat_ref[...]
        if mask_tail:
            # Ragged last HW chunk: zero out the out-of-range lanes.
            lane = jax.lax.broadcasted_iota(jnp.int32, (1, 1, thw), 2)
            keep = (j * thw + lane) < hw_total
            feat = jnp.where(keep, feat, jnp.zeros((), feat.dtype))

        # Spatial sum of this chunk, accumulated in f32 (no full-tile f32 copy
        # is kept live beyond the reduce).
        acc_ref[...] += jnp.sum(feat, axis=-1, dtype=jnp.float32)

        @pl.when(j == pl.num_programs(1) - 1)
        def _():
            # adaptive_avg_pool2d(x, 1): mean over spatial.
            x_f = acc_ref[...] * jnp.float32(inv_hw)          # (TB, C), lane=C
            xf_ref[...] = x_f

            # F.normalize(x, p=2, dim=1) via rsqrt on the EUP.
            ssq = jnp.sum(x_f * x_f, axis=-1, keepdims=True)
            x_n = x_f * jax.lax.rsqrt(jnp.maximum(ssq, jnp.float32(1e-24)))

            # Weights pre-normalized, pre-scaled by temp, pre-transposed.
            score_ref[...] = jnp.dot(x_n.astype(w_ref.dtype), w_ref[...],
                                     preferred_element_type=jnp.float32)

    return kernel


def mynet_forward(feat_nchw, mu, temp):
    """MYNET.forward ('cos' mode, stochastic=False, aug=False).

    feat_nchw: (B, C, H, W) encoder output feature map (NCHW, any float dtype;
               read in its native layout — no HBM transpose copy).
    mu:        (K, C)       StochasticClassifier.mu
    Returns (score, x_f, x_f_a) like the PyTorch forward (x_f == x_f_a).
    """
    B, C, H, W = feat_nchw.shape
    K = mu.shape[0]
    HW = H * W

    # Native NCHW layout: (B, C, HW) — contiguous reshape, no data movement.
    feat = feat_nchw.reshape(B, C, HW)
    itemsize = jnp.dtype(feat.dtype).itemsize

    # Hoist the classifier-weight normalization + temperature out of the loop.
    mu_f32 = mu.astype(jnp.float32)
    w_norm = mu_f32 / jnp.maximum(
        jnp.sqrt(jnp.sum(mu_f32 * mu_f32, axis=-1, keepdims=True)),
        jnp.float32(1e-12))
    w_scaled = (jnp.float32(temp) * w_norm).T                 # (C, K)

    # Pad K to a lane-width multiple for unmasked lane-dense score stores.
    Kp = _round_up(K, 128)
    if Kp != K:
        w_scaled = jnp.pad(w_scaled, ((0, 0), (0, Kp - K)))

    # MXU dtype: bf16 when the encoder runs in bf16 (f32 accumulation), else
    # keep f32 so numerics match an f32 pipeline.
    compute_dtype = jnp.bfloat16 if feat.dtype == jnp.bfloat16 else jnp.float32
    w_scaled = w_scaled.astype(compute_dtype)
    w_itemsize = jnp.dtype(compute_dtype).itemsize

    # Generation-aware tile target: ~1/12 of physical VMEM, clamped [2, 10] MiB
    # (v7x 64 MiB -> ~5.3 MiB, v5e/v6e 128 MiB -> 10 MiB).
    cap = _vmem_capacity_bytes()
    target = int(min(10 << 20, max(2 << 20, cap // 12)))

    TB = _pick_batch_tile(B, C, HW, itemsize, target)
    THW = _pick_hw_chunk(HW, TB, C, itemsize, target)
    n_b = -(-B // TB)
    n_hw = -(-HW // THW)
    mask_tail = (THW != HW) and (HW % THW != 0)

    # VMEM budget: double-buffered feat tile + upcast/mask temp + weights
    # (double-buffered) + outputs + accumulator scratch + headroom.
    feat_tile = TB * C * THW * itemsize
    vmem_bytes = (2 * feat_tile
                  + TB * C * THW * 4
                  + 2 * C * Kp * w_itemsize
                  + 2 * (TB * Kp * 4 + TB * C * 4)
                  + TB * C * 4
                  + (2 << 20))
    vmem_cap = max(16 << 20, (cap * 3) // 4)   # 48 MiB on v7x, 96 MiB v5e/v6e
    vmem_limit = int(min(max(vmem_bytes, 8 << 20), vmem_cap))

    kernel = _make_head_kernel(HW, THW, mask_tail)

    score_p, x_f = pl.pallas_call(
        kernel,
        grid=(n_b, n_hw),
        out_shape=(
            jax.ShapeDtypeStruct((B, Kp), jnp.float32),   # score (K padded)
            jax.ShapeDtypeStruct((B, C), jnp.float32),    # pooled features
        ),
        in_specs=[
            pl.BlockSpec((TB, C, THW), lambda i, j: (i, 0, j)),
            pl.BlockSpec((C, Kp), lambda i, j: (0, 0)),   # grid-invariant
        ],
        out_specs=(
            pl.BlockSpec((TB, Kp), lambda i, j: (i, 0)),
            pl.BlockSpec((TB, C), lambda i, j: (i, 0)),
        ),
        scratch_shapes=[pltpu.VMEM((TB, C), jnp.float32)],
        compiler_params=pltpu.CompilerParams(
            dimension_semantics=("parallel", "arbitrary"),
            vmem_limit_bytes=vmem_limit,
        ),
    )(feat, w_scaled)

    score = score_p[:, :K]
    x_f_a = x_f        # x = x_f_a.unsqueeze(1).squeeze(1) -> identical tensor
    return score, x_f, x_f_a


def _reference_forward(feat_nchw, mu, temp):
    """Pure-JAX reference mirroring the PyTorch ops (sanity check)."""
    B, C, H, W = feat_nchw.shape
    x_f = jnp.mean(feat_nchw.astype(jnp.float32).reshape(B, C, H * W), axis=-1)
    eps = 1e-12
    mu = mu.astype(jnp.float32)
    w = mu / jnp.maximum(jnp.linalg.norm(mu, axis=1, keepdims=True), eps)
    x = x_f / jnp.maximum(jnp.linalg.norm(x_f, axis=1, keepdims=True), eps)
    return (x @ w.T) * temp, x_f, x_f


if __name__ == "__main__":
    key = jax.random.PRNGKey(0)
    k_feat, k_mu = jax.random.split(key)

    # Small shapes consistent with the module (num_features stands in for 512,
    # num_classes for args.num_all, temp for args.network.temperature).
    B, C, H, W = 2, 32, 8, 8          # encoder feature map (NCHW)
    num_classes = 16
    temp = 16.0

    feat = jax.random.normal(k_feat, (B, C, H, W), dtype=jnp.float32)

    # Parameter init matching __init__:
    #   mu    = 0.01 * randn(num_classes, num_features)
    #   sigma = zeros(num_classes, num_features)   (unused when stochastic=False)
    mu = 0.01 * jax.random.normal(k_mu, (num_classes, C), dtype=jnp.float32)
    sigma = jnp.zeros((num_classes, C), dtype=jnp.float32)  # noqa: F841

    score, x_f, x_f_a = mynet_forward(feat, mu, temp)
    jax.block_until_ready(score)
    jax.block_until_ready(x_f)

    ref_score, ref_xf, _ = _reference_forward(feat, mu, temp)
    assert score.shape == (B, num_classes)
    assert x_f.shape == (B, C) and x_f_a.shape == (B, C)
    # Pooled features are exact f32 reductions -> tight tolerance.
    assert jnp.allclose(x_f, ref_xf, atol=1e-5, rtol=1e-5)
    # Score goes through MXU matmuls whose f32 decomposition (bf16 passes)
    # differs between XLA and Mosaic -> modest tolerance; structural bugs
    # (missing normalize / temp / transposed weights) are orders larger.
    assert jnp.allclose(score, ref_score, atol=5e-2, rtol=2e-2)

    print("KERNEL_OK")
</pallas_src>

<mosaic_0001>
module attributes {stable_mosaic.version = 11 : i64} {
  func.func @kernel(%arg0: i32, %arg1: i32, %arg2: memref<2x32x64xf32, #tpu.memory_space<vmem>>, %arg3: memref<32x128xf32, #tpu.memory_space<vmem>>, %arg4: memref<2x128xf32, #tpu.memory_space<vmem>>, %arg5: memref<2x32xf32, #tpu.memory_space<vmem>>, %arg6: memref<2x32xf32, #tpu.memory_space<vmem>>) attributes {dimension_semantics = [#tpu.dimension_semantics<parallel>, #tpu.dimension_semantics<arbitrary>], iteration_bounds = array<i64: 1, 1>, scalar_prefetch = 0 : i64, scratch_operands = 1 : i64, tpu.core_type = #tpu.core_type<tc>, window_params = [{transform_indices = @transform_0, window_bounds = array<i64: 2, 32, 64>}, {pipeline_mode = #tpu.pipeline_mode<synchronous>, transform_indices = @transform_1, window_bounds = array<i64: 32, 128>}, {transform_indices = @transform_2, window_bounds = array<i64: 2, 128>}, {transform_indices = @transform_3, window_bounds = array<i64: 2, 32>}]} {
    %c0_i32 = arith.constant 0 : i32
    %0 = arith.cmpi eq, %arg1, %c0_i32 : i32
    %1 = arith.extui %0 : i1 to i32
    %c0_i32_0 = arith.constant 0 : i32
    %2 = arith.cmpi ne, %1, %c0_i32_0 : i32
    scf.if %2 {
      %cst_9 = arith.constant 0.000000e+00 : f32
      %11 = vector.broadcast %cst_9 : f32 to vector<2x32xf32>
      %c0_10 = arith.constant 0 : index
      %c0_11 = arith.constant 0 : index
      %12 = vector.load %arg6[%c0_10, %c0_11] : memref<2x32xf32, #tpu.memory_space<vmem>>, vector<2x32xf32>
      tpu.vector_store %arg6[%c0_10, %c0_11], %11 {strides = array<i32>} : memref<2x32xf32, #tpu.memory_space<vmem>>, vector<2x32xf32>,
    } else {
    }
    %c0 = arith.constant 0 : index
    %c0_1 = arith.constant 0 : index
    %c0_2 = arith.constant 0 : index
    %3 = vector.load %arg2[%c0, %c0_1, %c0_2] : memref<2x32x64xf32, #tpu.memory_space<vmem>>, vector<2x32x64xf32>
    %c0_3 = arith.constant 0 : index
    %c0_4 = arith.constant 0 : index
    %4 = vector.load %arg6[%c0_3, %c0_4] : memref<2x32xf32, #tpu.memory_space<vmem>>, vector<2x32xf32>
    %cst = arith.constant dense<0.000000e+00> : vector<2x32xf32>
    %5 = vector.multi_reduction <add>, %3, %cst [2] : vector<2x32x64xf32> to vector<2x32xf32>
    %6 = arith.addf %4, %5 : vector<2x32xf32>
    %c0_5 = arith.constant 0 : index
    %c0_6 = arith.constant 0 : index
    %7 = vector.load %arg6[%c0_5, %c0_6] : memref<2x32xf32, #tpu.memory_space<vmem>>, vector<2x32xf32>
    tpu.vector_store %arg6[%c0_5, %c0_6], %6 {strides = array<i32>} : memref<2x32xf32, #tpu.memory_space<vmem>>, vector<2x32xf32>,
    %c0_i32_7 = arith.constant 0 : i32
    %8 = arith.cmpi eq, %arg1, %c0_i32_7 : i32
    %9 = arith.extui %8 : i1 to i32
    %c0_i32_8 = arith.constant 0 : i32
    %10 = arith.cmpi ne, %9, %c0_i32_8 : i32
    scf.if %10 {
      %c0_9 = arith.constant 0 : index
      %c0_10 = arith.constant 0 : index
      %11 = vector.load %arg6[%c0_9, %c0_10] : memref<2x32xf32, #tpu.memory_space<vmem>>, vector<2x32xf32>
      %cst_11 = arith.constant 1.562500e-02 : f32
      %12 = vector.broadcast %cst_11 : f32 to vector<2x32xf32>
      %13 = arith.mulf %11, %12 : vector<2x32xf32>
      %c0_12 = arith.constant 0 : index
      %c0_13 = arith.constant 0 : index
      %14 = vector.load %arg5[%c0_12, %c0_13] : memref<2x32xf32, #tpu.memory_space<vmem>>, vector<2x32xf32>
      tpu.vector_store %arg5[%c0_12, %c0_13], %13 {strides = array<i32>} : memref<2x32xf32, #tpu.memory_space<vmem>>, vector<2x32xf32>,
      %15 = arith.mulf %13, %13 : vector<2x32xf32>
      %cst_14 = arith.constant dense<0.000000e+00> : vector<2xf32>
      %16 = vector.multi_reduction <add>, %15, %cst_14 [1] : vector<2x32xf32> to vector<2xf32>
      %17 = vector.shape_cast %16 : vector<2xf32> to vector<2x1xf32>
      %cst_15 = arith.constant 1.000000e-24 : f32
      %18 = vector.broadcast %cst_15 : f32 to vector<2x1xf32>
      %19 = arith.maximumf %17, %18 : vector<2x1xf32>
      %20 = math.rsqrt %19 : vector<2x1xf32>
      %21 = vector.broadcast %20 : vector<2x1xf32> to vector<2x32xf32>
      %22 = arith.mulf %13, %21 : vector<2x32xf32>
      %c0_16 = arith.constant 0 : index
      %c0_17 = arith.constant 0 : index
      %23 = vector.load %arg3[%c0_16, %c0_17] : memref<32x128xf32, #tpu.memory_space<vmem>>, vector<32x128xf32>
      %cst_18 = arith.constant dense<0.000000e+00> : vector<2x128xf32>
      %24 = tpu.matmul %22, %23, %cst_18 {dimension_numbers = #tpu.dot_dimension_numbers<[1], [0], [0], [1], [0, 0, 1, 1], [], []>} : vector<2x32xf32>, vector<32x128xf32>, vector<2x128xf32> -> vector<2x128xf32>
      %c0_19 = arith.constant 0 : index
      %c0_20 = arith.constant 0 : index
      %25 = vector.load %arg4[%c0_19, %c0_20] : memref<2x128xf32, #tpu.memory_space<vmem>>, vector<2x128xf32>
      tpu.vector_store %arg4[%c0_19, %c0_20], %24 {strides = array<i32>} : memref<2x128xf32, #tpu.memory_space<vmem>>, vector<2x128xf32>,
    } else {
    }
    return
  }
  func.func @transform_0(%arg0: i32, %arg1: i32) -> (i32, i32, i32) {
    %c0_i32 = arith.constant 0 : i32
    %c0_i32_0 = arith.constant 0 : i32
    return %arg0, %c0_i32, %arg1 : i32, i32, i32
  }
  func.func @transform_1(%arg0: i32, %arg1: i32) -> (i32, i32) {
    %c0_i32 = arith.constant 0 : i32
    %c0_i32_0 = arith.constant 0 : i32
    %c0_i32_1 = arith.constant 0 : i32
    return %c0_i32, %c0_i32_0 : i32, i32
  }
  func.func @transform_2(%arg0: i32, %arg1: i32) -> (i32, i32) {
    %c0_i32 = arith.constant 0 : i32
    %c0_i32_0 = arith.constant 0 : i32
    return %arg0, %c0_i32 : i32, i32
  }
  func.func @transform_3(%arg0: i32, %arg1: i32) -> (i32, i32) {
    %c0_i32 = arith.constant 0 : i32
    %c0_i32_0 = arith.constant 0 : i32
    return %arg0, %c0_i32 : i32, i32
  }
}

</mosaic_0001>

<llo_original>
// kernel: tpu_custom_call.1
$region0: #{tpu_custom_call.1}
  #allocation0 [shape = 'u32[]', space=smem, size = 0x4, offset = 0x4, fixed_abs, tag = 'smem constant byte address 0x4 - core index']
  #allocation1 [shape = 'u32[144,128]{1,0:T(1,128)}', space=vmem, size = 0x12000, scoped, tag = 'internal scratch']
  #allocation2 [shape = 'f32[2,32]{1,0:T(2,128)}', space=vmem, size = 0x400, scoped, tag = 'scratch operand']
  %s0 = inlined_call_operand.hbm [shape: f32[2,32,64], index: 0, kind: input, shape index: {}]
  %s1 = inlined_call_operand.hbm [shape: f32[32,128], index: 1, kind: input, shape index: {}]
  %s2 = inlined_call_operand.hbm [shape: f32[2,128], index: 2, kind: output, shape index: {0}]
  %s3 = inlined_call_operand.hbm [shape: f32[2,32], index: 3, kind: output, shape index: {1}]
  %4 = xla_tuple %s2, %s3
  %s5 = sld [smem:[#allocation0]]
  $region42: #{tpu_custom_call.1} parent=0
    _
  %s7 = ssub.s32 1, %s5
  %s8 = scalar_select 0, %s7, %s5
  $region1: #{tpu_custom_call.1} parent=0
    #allocation3 [shape = 'u8[32768]{0}', space=vmem, size = 0x8000, scoped, tag = 'input window, operand 0, single buffered']
    #allocation4 [shape = 's32[1]{0}', space=sflag, size = 0x4, scoped, tag = 'scoped memory for tpu_custom_call.1']
    #allocation5 [shape = 's32[1]{0}', space=sflag, size = 0x4, scoped, tag = 'scoped memory for tpu_custom_call.1']
    #allocation6 [shape = 'u8[16384]{0}', space=vmem, size = 0x4000, scoped, tag = 'input window, operand 1, single buffered']
    #allocation7 [shape = 's32[1]{0}', space=sflag, size = 0x4, scoped, tag = 'scoped memory for tpu_custom_call.1']
    #allocation8 [shape = 'u8[1024]{0}', space=vmem, size = 0x400, scoped, tag = 'output window, operand 0, single buffered']
    #allocation9 [shape = 'u8[1024]{0}', space=vmem, size = 0x400, scoped, tag = 'output window, operand 1, single buffered']
    #allocation10 [shape = 's32[1]{0}', space=sflag, size = 0x4, scoped, tag = 'scoped memory for tpu_custom_call.1']
    %9 = vsyncpa [#allocation4], 0
    %10 = vsyncpa [#allocation7], 0
    %11 = vsyncpa [#allocation5], 0
    %12 = vsyncpa [#allocation10], 0
    // Predicated region
    $region2: #{tpu_custom_call.1} parent=1 // pred_check
      _
    $region3: #{tpu_custom_call.1} parent=1 // pred_check_branch
      %14 = sbr.rel (0) target = $region5
    $region4: #{tpu_custom_call.1} parent=1 // pred_region
      %s16 = ssub.s32 1024, 1024
      %17 = vsyncadd [#allocation4], %s16
      %s18 = sshll.u32 [#allocation3], 4
      %s19 = int_to_ptr.vmem [resolvable:$true] %s18
      %24 = dma.hbm_to_vmem [thread:$0]  %s0, 1024, %s19, [#allocation4], 128, 128, 8
    $region5: #{tpu_custom_call.1} parent=1 // pred_fallthru
      _
    // Predicated region
    $region6: #{tpu_custom_call.1} parent=1 // pred_check
      _
    $region7: #{tpu_custom_call.1} parent=1 // pred_check_branch
      %26 = sbr.rel (0) target = $region9
    $region8: #{tpu_custom_call.1} parent=1 // pred_region
      %s28 = ssub.s32 512, 512
      %29 = vsyncadd [#allocation7], %s28
      %s30 = sshll.u32 [#allocation6], 4
      %s31 = int_to_ptr.vmem [resolvable:$true] %s30
      %36 = dma.hbm_to_vmem [thread:$0]  %s1, 512, %s31, [#allocation7], 128, 128, 8
    $region9: #{tpu_custom_call.1} parent=1 // pred_fallthru
      _
    // Predicated region
    $region10: #{tpu_custom_call.1} parent=1 // pred_check
      _
    $region11: #{tpu_custom_call.1} parent=1 // pred_check_branch
      %38 = sbr.rel (0) target = $region13
    $region12: #{tpu_custom_call.1} parent=1 // pred_region
      %39 = dma.done [#allocation4], 1024
    $region13: #{tpu_custom_call.1} parent=1 // pred_fallthru
      _
    // Predicated region
    $region14: #{tpu_custom_call.1} parent=1 // pred_check
      _
    $region15: #{tpu_custom_call.1} parent=1 // pred_check_branch
      %41 = sbr.rel (0) target = $region17
    $region16: #{tpu_custom_call.1} parent=1 // pred_region
      %42 = dma.done [#allocation7], 512
    $region17: #{tpu_custom_call.1} parent=1 // pred_fallthru
      _
    %p43 = scmp.eq.s32.totalorder 0, 0
    // Predicated region
    $region18: #{tpu_custom_call.1} parent=1 // pred_check
      %p44 = pneg %p43
    $region19: #{tpu_custom_call.1} parent=1 // pred_check_branch
      %46 = sbr.rel (%p44) target = $region21
    $region20: #{tpu_custom_call.1} parent=1 // pred_region
      %vm47 = vcmask 254976
      %48 = vst.msk [vmem:[#allocation2] sm:$0x3] %vm47, 0.0
    $region21: #{tpu_custom_call.1} parent=1 // pred_fallthru
      _
    %v49 = vld [vmem:[#allocation3] sm:$0xff]
    %v50 = vld [vmem:[#allocation3 + $0x8] sm:$0xff]
    %v51 = vld [vmem:[#allocation3 + $0x10] sm:$0xff]
    %v52 = vld [vmem:[#allocation3 + $0x18] sm:$0xff]
    %v53 = vld [vmem:[#allocation3 + $0x20] sm:$0xff]
    %v54 = vld [vmem:[#allocation3 + $0x28] sm:$0xff]
    %v55 = vld [vmem:[#allocation3 + $0x30] sm:$0xff]
    %v56 = vld [vmem:[#allocation3 + $0x38] sm:$0xff]
    %v57 = vld [vmem:[#allocation2] sm:$0x3]
    %vm58 = vcmask 523264
    %v59 = vsel %vm58, %v49, 0.0
    %60 = vadd.xlane.f32.xlu0 %v59
    %v61 = vpop.xlane.xlu0 %60
    %v62 = vsel %vm58, %v50, 0.0
    %63 = vadd.xlane.f32.xlu0 %v62
    %v64 = vpop.xlane.xlu0 %63
    %v65 = vsel %vm58, %v51, 0.0
    %66 = vadd.xlane.f32.xlu0 %v65
    %v67 = vpop.xlane.xlu0 %66
    %v68 = vsel %vm58, %v52, 0.0
    %69 = vadd.xlane.f32.xlu0 %v68
    %v70 = vpop.xlane.xlu0 %69
    %v71 = vsel %vm58, %v53, 0.0
    %72 = vadd.xlane.f32.xlu0 %v71
    %v73 = vpop.xlane.xlu0 %72
    %v74 = vsel %vm58, %v54, 0.0
    %75 = vadd.xlane.f32.xlu0 %v74
    %v76 = vpop.xlane.xlu0 %75
    %v77 = vsel %vm58, %v55, 0.0
    %78 = vadd.xlane.f32.xlu0 %v77
    %v79 = vpop.xlane.xlu0 %78
    %v80 = vsel %vm58, %v56, 0.0
    %81 = vadd.xlane.f32.xlu0 %v80
    %v82 = vpop.xlane.xlu0 %81
    %v91 = vlaneseq
    %v92 = vand.u32 %v91, 127
    %v93 = vlaneseq
    %v94 = vshrl.u32 %v93, 7
    %v95 = vsub.s32 %v92, %v94
    %v96 = vrot.slane %v61, %v95
    %v97 = vadd.s32 %v92, 4294967288
    %v98 = vlaneseq
    %v99 = vshrl.u32 %v98, 7
    %v100 = vsub.s32 %v97, %v99
    %v101 = vrot.slane %v64, %v100
    %vm102 = vcmask 130112
    %v103 = vsel %vm102, %v101, %v96
    %v104 = vadd.s32 %v92, 4294967280
    %v105 = vlaneseq
    %v106 = vshrl.u32 %v105, 7
    %v107 = vsub.s32 %v104, %v106
    %v108 = vrot.slane %v67, %v107
    %vm109 = vcmask 195712
    %v110 = vsel %vm109, %v108, %v103
    %v111 = vadd.s32 %v92, 4294967272
    %v112 = vlaneseq
    %v113 = vshrl.u32 %v112, 7
    %v114 = vsub.s32 %v111, %v113
    %v115 = vrot.slane %v70, %v114
    %vm116 = vcmask 261312
    %v117 = vsel %vm116, %v115, %v110
    %v118 = vlaneseq
    %v119 = vshrl.u32 %v118, 7
    %v120 = vsub.s32 %v92, %v119
    %v121 = vrot.slane %v73, %v120
    %v122 = vlaneseq
    %v123 = vshrl.u32 %v122, 7
    %v124 = vsub.s32 %v97, %v123
    %v125 = vrot.slane %v76, %v124
    %v126 = vsel %vm102, %v125, %v121
    %v127 = vlaneseq
    %v128 = vshrl.u32 %v127, 7
    %v129 = vsub.s32 %v104, %v128
    %v130 = vrot.slane %v79, %v129
    %v131 = vsel %vm109, %v130, %v126
    %v132 = vlaneseq
    %v133 = vshrl.u32 %v132, 7
    %v134 = vsub.s32 %v111, %v133
    %v135 = vrot.slane %v82, %v134
    %v136 = vsel %vm116, %v135, %v131
    %vm137 = vcmask 1041409
    %v138 = vsel %vm137, %v136, %v117
    %v140 = vadd.f32 %v57, %v138
    %vm141 = vcmask 254976
    %142 = vst.msk [vmem:[#allocation2] sm:$0x3] %vm141, %v140
    // Predicated region
    $region22: #{tpu_custom_call.1} parent=1 // pred_check
      %p143 = pneg %p43
    $region23: #{tpu_custom_call.1} parent=1 // pred_check_branch
      %145 = sbr.rel (%p143) target = $region25
    $region24: #{tpu_custom_call.1} parent=1 // pred_region
      %v146 = vld [vmem:[#allocation2] sm:$0x3]
      %v147 = vmul.f32 %v146, 0.015625
      %148 = vst.msk [vmem:[#allocation9] sm:$0x3] %vm141, %v147
      %v149 = vmul.f32 %v147, %v147
      %v150 = vsel %vm141, %v149, 0.0
      %151 = vadd.xlane.f32.xlu0 %v150
      %v152 = vpop.xlane.xlu0 %151
      %v153 = vmax.f32 %v152, 1e-24
      %v154 = vrsqrt.pop %v153
      %v155 = vmul.f32 %v147, %v154
      %v156 = vld [vmem:[#allocation6] sm:$0xff]
      %v157 = vld [vmem:[#allocation6 + $0x8] sm:$0xff]
      %v158 = vld [vmem:[#allocation6 + $0x10] sm:$0xff]
      %v159 = vld [vmem:[#allocation6 + $0x18] sm:$0xff]
      %vm160 = vcmask 261120
      %v162 = vsel %vm160, %v155, 0
      %164 = vmatprep.subr.mxu0 0.0
      %165 = vmatpush1.msra.mxu0 0.0
      %166 = vmatprep.subr.mxu0 0.0
      %167 = vmatpush1.msra.mxu0 0.0
      %168 = vmatprep.subr.mxu0 0.0
      %169 = vmatpush1.msra.mxu0 0.0
      %170 = vmatprep.subr.mxu0 0.0
      %171 = vmatpush1.msra.mxu0 0.0
      %172 = vmatprep.subr.mxu0 0.0
      %173 = vmatpush1.msra.mxu0 0.0
      %174 = vmatprep.subr.mxu0 0.0
      %175 = vmatpush1.msra.mxu0 0.0
      %176 = vmatprep.subr.mxu0 0.0
      %177 = vmatpush1.msra.mxu0 0.0
      %178 = vmatprep.subr.mxu0 0.0
      %179 = vmatpush1.msra.mxu0 0.0
      %180 = vmatprep.subr.mxu0 0.0
      %181 = vmatpush1.msra.mxu0 0.0
      %182 = vmatprep.subr.mxu0 0.0
      %183 = vmatpush1.msra.mxu0 0.0
      %184 = vmatprep.subr.mxu0 0.0
      %185 = vmatpush1.msra.mxu0 0.0
      %186 = vmatprep.subr.mxu0 0.0
      %187 = vmatpush1.msra.mxu0 0.0
      %188 = vmatprep.subr.mxu0 0.0
      %189 = vmatpush1.msra.mxu0 %v159
      %190 = vmatprep.subr.mxu0 0.0
      %191 = vmatpush1.msra.mxu0 %v158
      %192 = vmatprep.subr.mxu0 0.0
      %193 = vmatpush1.msra.mxu0 %v157
      %194 = vmatprep.subr.mxu0 0.0
      %195 = vmatpush1.msra.mxu0 %v156
      %196 = vmatprep.subr.mxu0 0.0
      %197 = vmatpush2.msra.mxu0 0.0
      %198 = vmatprep.subr.mxu0 0.0
      %199 = vmatpush2.msra.mxu0 0.0
      %200 = vmatprep.subr.mxu0 0.0
      %201 = vmatpush2.msra.mxu0 0.0
      %202 = vmatprep.subr.mxu0 0.0
      %203 = vmatpush2.msra.mxu0 0.0
      %204 = vmatprep.subr.mxu0 0.0
      %205 = vmatpush2.msra.mxu0 0.0
      %206 = vmatprep.subr.mxu0 0.0
      %207 = vmatpush2.msra.mxu0 0.0
      %208 = vmatprep.subr.mxu0 0.0
      %209 = vmatpush2.msra.mxu0 0.0
      %210 = vmatprep.subr.mxu0 0.0
      %211 = vmatpush2.msra.mxu0 0.0
      %212 = vmatprep.subr.mxu0 0.0
      %213 = vmatpush2.msra.mxu0 0.0
      %214 = vmatprep.subr.mxu0 0.0
      %215 = vmatpush2.msra.mxu0 0.0
      %216 = vmatprep.subr.mxu0 0.0
      %217 = vmatpush2.msra.mxu0 0.0
      %218 = vmatprep.subr.mxu0 0.0
      %219 = vmatpush2.msra.mxu0 0.0
      %220 = vmatprep.subr.mxu0 0.0
      %221 = vmatpush2.msra.mxu0 0.0
      %222 = vmatprep.subr.mxu0 0.0
      %223 = vmatpush2.msra.mxu0 0.0
      %224 = vmatprep.subr.mxu0 0.0
      %225 = vmatpush2.msra.mxu0 0.0
      %226 = vmatprep.subr.mxu0 0.0
      %227 = vmatpush2.msra.mxu0 0.0
      %228 = vmatprep.mubr.f32.mxu0 0.0
      %229 = vmatmul.mubr.f32.gmra.mxu0 %v162
      %v230 = vpop.f32.mrf.mxu0
      %v231 = vadd.f32 0.0, %v230
      %v232 = vpop.f32.mrf.mxu0
      %233 = vdwg.mxu0
      %234 = vst [vmem:[#allocation8] sm:$0x3] %v231
    $region25: #{tpu_custom_call.1} parent=1 // pred_fallthru
      _
    // Predicated region
    $region26: #{tpu_custom_call.1} parent=1 // pred_check
      _
    $region27: #{tpu_custom_call.1} parent=1 // pred_check_branch
      %236 = sbr.rel (0) target = $region29
    $region28: #{tpu_custom_call.1} parent=1 // pred_region
      %s238 = ssub.s32 32, 32
      %239 = vsyncadd [#allocation5], %s238
      %s241 = sshll.u32 [#allocation8], 4
      %s242 = int_to_ptr.vmem [resolvable:$true] %s241
      %244 = dma.vmem_to_hbm [thread:$0]  %s242, 32, %s2, [#allocation5]
    $region29: #{tpu_custom_call.1} parent=1 // pred_fallthru
      _
    // Predicated region
    $region30: #{tpu_custom_call.1} parent=1 // pred_check
      _
    $region31: #{tpu_custom_call.1} parent=1 // pred_check_branch
      %246 = sbr.rel (0) target = $region33
    $region32: #{tpu_custom_call.1} parent=1 // pred_region
      %s248 = ssub.s32 32, 32
      %249 = vsyncadd [#allocation10], %s248
      %s251 = sshll.u32 [#allocation9], 4
      %s252 = int_to_ptr.vmem [resolvable:$true] %s251
      %254 = dma.vmem_to_hbm [thread:$0]  %s252, 32, %s3, [#allocation10]
    $region33: #{tpu_custom_call.1} parent=1 // pred_fallthru
      _
    // Predicated region
    $region34: #{tpu_custom_call.1} parent=1 // pred_check
      _
    $region35: #{tpu_custom_call.1} parent=1 // pred_check_branch
      %256 = sbr.rel (0) target = $region37
    $region36: #{tpu_custom_call.1} parent=1 // pred_region
      %257 = dma.done [#allocation5], 32
    $region37: #{tpu_custom_call.1} parent=1 // pred_fallthru
      _
    // Predicated region
    $region38: #{tpu_custom_call.1} parent=1 // pred_check
      _
    $region39: #{tpu_custom_call.1} parent=1 // pred_check_branch
      %259 = sbr.rel (0) target = $region41
    $region40: #{tpu_custom_call.1} parent=1 // pred_region
      %260 = dma.done [#allocation10], 32
    $region41: #{tpu_custom_call.1} parent=1 // pred_fallthru
      _
    %261 = vsyncpa [#allocation4], 1
    %262 = vsyncpa [#allocation7], 1
    %263 = vsyncpa [#allocation5], 1
    %264 = vsyncpa [#allocation10], 1

</llo_original>
